<compile_context>
chip_gen: v6e
topology: v6e:2x2x1
jax: 0.10.0
libtpu: 0.0.40
codegen_flags: <defaults>
</compile_context>

<pallas_src>
import jax
import jax.numpy as jnp
from jax.experimental import pallas as pl
from jax.experimental.pallas import tpu as pltpu


def _round_up(n, m):
    return ((n + m - 1) // m) * m


def _rnn_kernel(x_ref, wT_ref, uT_ref, bias_ref, out_ref, h_scr):
    # x_ref:    (Tc*Bp, Ep)  time-major, batch-flattened (padded) input chunk
    # wT_ref:   (Ep, Hp)     W.T  (constant index_map, resident)
    # uT_ref:   (Hp, Hp)     U.T  (constant index_map, resident)
    # bias_ref: (1, Hp)      W_b + U_b + bias_extra (f32)
    # out_ref:  (Tc*Bp, Hp)  hidden states for this chunk; also used as the
    #                        staging buffer for the fused input projection
    # h_scr:    (Bp, Hp)     hidden state, persists across the T-chunk grid axis
    t_idx = pl.program_id(0)

    @pl.when(t_idx == 0)
    def _():
        h_scr[...] = jnp.zeros_like(h_scr)

    # Fused input projection for the whole chunk: one big MXU matmul, off the
    # per-step serial path.  Staged in the output block (f32 output -> exact).
    out_ref[...] = (
        jnp.dot(x_ref[...], wT_ref[...], preferred_element_type=jnp.float32)
        + bias_ref[...]
    ).astype(out_ref.dtype)

    # Keep U^T resident for the chunk (Hp=128 -> 16 vregs; acceptable here).
    uT = uT_ref[...]
    bp = h_scr.shape[0]
    n_steps = out_ref.shape[0] // bp

    def step(t, h):
        # bp is a multiple of 8, so every per-step slice is sublane-aligned.
        row = pl.multiple_of(t * bp, 8)
        pre = (
            jnp.dot(h.astype(uT.dtype), uT, preferred_element_type=jnp.float32)
            + out_ref[pl.ds(row, bp), :]
        )
        h_new = jnp.tanh(pre)
        out_ref[pl.ds(row, bp), :] = h_new.astype(out_ref.dtype)
        return h_new

    # Serial recurrence: bounded unroll keeps LLO scheduling visibility without
    # the full-unroll instruction/vreg blow-up at large Tc.
    h_final = jax.lax.fori_loop(
        0, n_steps, step, h_scr[...], unroll=min(n_steps, 8)
    )
    h_scr[...] = h_final


def my_rnn_forward(x, W_w, W_b, U_w, U_b, bias_extra, *, t_chunk=None,
                   mxu_dtype=jnp.float32,
                   vmem_block_budget_bytes=24 * 1024 * 1024):
    """x: (B, T, E).  Returns (resultEmbs (T, B, H), h_last (1, B, H)) -- batch_first=False."""
    B, T, E = x.shape
    H = U_w.shape[0]
    assert E == H, "MyRNN forward only works when embDim == hiddenDim"
    out_dtype = x.dtype

    # --- dense-tile padding: sublane (batch) -> x8, lane (E/H) -> x128 --------
    Bp = _round_up(B, 8)
    Ep = _round_up(E, 128)
    Hp = _round_up(H, 128)

    # Time-major, padded, flattened-to-2D input: (T*Bp, Ep).  One wrapper-side
    # transpose/pad copy of x -- far cheaper than the old xproj HBM round trip.
    x_tm = jnp.transpose(x, (1, 0, 2))                              # (T, B, E)
    x_tm = jnp.pad(x_tm, ((0, 0), (0, Bp - B), (0, Ep - E)))
    x_flat = x_tm.reshape(T * Bp, Ep).astype(mxu_dtype)

    # Zero-padded weights: padded hidden columns get 0 bias / 0 weights, so the
    # padded hidden entries stay exactly tanh(0)=0 and never pollute real ones.
    wT = jnp.pad(jnp.transpose(W_w), ((0, Ep - E), (0, Hp - H))).astype(mxu_dtype)
    uT = jnp.pad(jnp.transpose(U_w), ((0, Hp - H), (0, Hp - H))).astype(mxu_dtype)
    bias_total = (W_b + U_b + bias_extra).reshape(1, H)
    bias_total = jnp.pad(bias_total, ((0, 0), (0, Hp - H))).astype(jnp.float32)

    # --- VMEM-budgeted default T-chunk ----------------------------------------
    in_item = jnp.dtype(mxu_dtype).itemsize
    out_item = jnp.dtype(out_dtype).itemsize
    fixed = (2 * (Ep * Hp + Hp * Hp) * in_item          # double-buffered weights
             + 2 * Hp * 4                               # bias block
             + Bp * Hp * 4)                             # h scratch
    per_step = Bp * (2 * Ep * in_item + 2 * Hp * out_item)  # dbl-buffered in/out rows
    if t_chunk is None:
        budget = max(vmem_block_budget_bytes - fixed, per_step)
        cand = max(1, min(T, budget // per_step))
        while cand > 1 and T % cand != 0:
            cand -= 1
        t_chunk = cand if T % cand == 0 else T
    assert T % t_chunk == 0

    rows = t_chunk * Bp
    grid = (T // t_chunk,)

    grid_spec = pltpu.PrefetchScalarGridSpec(
        num_scalar_prefetch=0,
        grid=grid,
        in_specs=[
            pl.BlockSpec((rows, Ep), lambda t: (t, 0)),
            pl.BlockSpec((Ep, Hp), lambda t: (0, 0)),
            pl.BlockSpec((Hp, Hp), lambda t: (0, 0)),
            pl.BlockSpec((1, Hp), lambda t: (0, 0)),
        ],
        out_specs=pl.BlockSpec((rows, Hp), lambda t: (t, 0)),
        scratch_shapes=[pltpu.VMEM((Bp, Hp), jnp.float32)],
    )

    out_flat = pl.pallas_call(
        _rnn_kernel,
        out_shape=jax.ShapeDtypeStruct((T * Bp, Hp), out_dtype),
        grid_spec=grid_spec,
        compiler_params=pltpu.CompilerParams(
            # Single grid axis = T-chunks.  The hidden state is carried in
            # h_scr across chunks, so this axis MUST stay 'arbitrary' (serial);
            # do not reorder or parallelise it.
            dimension_semantics=("arbitrary",),
            # Explicit scoped-VMEM limit: safely under v7x's 64 MiB physical
            # VMEM and well under v5e/v6e's 128 MiB.
            vmem_limit_bytes=48 * 1024 * 1024,
        ),
    )(x_flat, wT, uT, bias_total)

    result_embs = out_flat.reshape(T, Bp, Hp)[:, :B, :H].astype(out_dtype)
    h_last = result_embs[T - 1:T]                                   # (1, B, H)
    return result_embs, h_last


def my_rnn_reference(x, W_w, W_b, U_w, U_b, bias_extra):
    """Pure-JAX reference mirroring the PyTorch forward (batch_first=False)."""
    B, T, E = x.shape
    H = U_w.shape[0]
    h0 = jnp.zeros((B, H), x.dtype)

    def step(h, x_t):
        h_new = jnp.tanh(h @ U_w.T + U_b + x_t @ W_w.T + W_b + bias_extra)
        return h_new, h_new

    h_last, hs = jax.lax.scan(step, h0, jnp.transpose(x, (1, 0, 2)))
    return hs, h_last[None, :, :]


if __name__ == "__main__":
    B, T = 2, 8
    embDim = hiddenDim = 32  # forward requires embDim == hiddenDim

    key = jax.random.PRNGKey(0)
    kx, kw, kwb, ku, kub, kb = jax.random.split(key, 6)

    x = jax.random.normal(kx, (B, T, embDim), jnp.float32)
    # nn.Linear(embDim, hiddenDim): weight (H, E), bias (H,)
    W_w = jax.random.normal(kw, (hiddenDim, embDim), jnp.float32) * 0.1
    W_b = jax.random.normal(kwb, (hiddenDim,), jnp.float32) * 0.1
    # nn.Linear(hiddenDim, hiddenDim)
    U_w = jax.random.normal(ku, (hiddenDim, hiddenDim), jnp.float32) * 0.1
    U_b = jax.random.normal(kub, (hiddenDim,), jnp.float32) * 0.1
    # extra bias Parameter ~ N(0, 1), shape (1, H)
    bias_extra = jax.random.normal(kb, (1, hiddenDim), jnp.float32)
    # TODO(synk): self.V (Linear(hiddenDim, embDim)) is defined but never used in forward; omitted.

    result_embs, h_last = my_rnn_forward(x, W_w, W_b, U_w, U_b, bias_extra)
    jax.block_until_ready((result_embs, h_last))

    ref_embs, ref_last = my_rnn_reference(x, W_w, W_b, U_w, U_b, bias_extra)
    assert result_embs.shape == (T, B, hiddenDim)
    assert h_last.shape == (1, B, hiddenDim)
    assert jnp.allclose(result_embs, ref_embs, atol=1e-5, rtol=1e-5)
    assert jnp.allclose(h_last, ref_last, atol=1e-5, rtol=1e-5)

    print("KERNEL_OK")
</pallas_src>

<mosaic_0001>
module attributes {stable_mosaic.version = 11 : i64} {
  func.func @_rnn_kernel(%arg0: i32, %arg1: memref<64x128xf32, #tpu.memory_space<vmem>>, %arg2: memref<128x128xf32, #tpu.memory_space<vmem>>, %arg3: memref<128x128xf32, #tpu.memory_space<vmem>>, %arg4: memref<1x128xf32, #tpu.memory_space<vmem>>, %arg5: memref<64x128xf32, #tpu.memory_space<vmem>>, %arg6: memref<8x128xf32, #tpu.memory_space<vmem>>) attributes {dimension_semantics = [#tpu.dimension_semantics<arbitrary>], iteration_bounds = array<i64: 1>, scalar_prefetch = 0 : i64, scratch_operands = 1 : i64, tpu.core_type = #tpu.core_type<tc>, window_params = [{transform_indices = @transform_0, window_bounds = array<i64: 64, 128>}, {pipeline_mode = #tpu.pipeline_mode<synchronous>, transform_indices = @transform_1, window_bounds = array<i64: 128, 128>}, {pipeline_mode = #tpu.pipeline_mode<synchronous>, transform_indices = @transform_2, window_bounds = array<i64: 128, 128>}, {pipeline_mode = #tpu.pipeline_mode<synchronous>, transform_indices = @transform_3, window_bounds = array<i64: 1, 128>}, {transform_indices = @transform_4, window_bounds = array<i64: 64, 128>}]} {
    %c0_i32 = arith.constant 0 : i32
    %0 = arith.cmpi eq, %arg0, %c0_i32 : i32
    %1 = arith.extui %0 : i1 to i32
    %c0_i32_0 = arith.constant 0 : i32
    %2 = arith.cmpi ne, %1, %c0_i32_0 : i32
    scf.if %2 {
      %cst_47 = arith.constant 0.000000e+00 : f32
      %85 = vector.broadcast %cst_47 : f32 to vector<8x128xf32>
      %c0_48 = arith.constant 0 : index
      %c0_49 = arith.constant 0 : index
      %86 = vector.load %arg6[%c0_48, %c0_49] : memref<8x128xf32, #tpu.memory_space<vmem>>, vector<8x128xf32>
      tpu.vector_store %arg6[%c0_48, %c0_49], %85 {strides = array<i32>} : memref<8x128xf32, #tpu.memory_space<vmem>>, vector<8x128xf32>,
    } else {
    }
    %c0 = arith.constant 0 : index
    %c0_1 = arith.constant 0 : index
    %3 = vector.load %arg1[%c0, %c0_1] : memref<64x128xf32, #tpu.memory_space<vmem>>, vector<64x128xf32>
    %c0_2 = arith.constant 0 : index
    %c0_3 = arith.constant 0 : index
    %4 = vector.load %arg2[%c0_2, %c0_3] : memref<128x128xf32, #tpu.memory_space<vmem>>, vector<128x128xf32>
    %cst = arith.constant dense<0.000000e+00> : vector<64x128xf32>
    %5 = tpu.matmul %3, %4, %cst {dimension_numbers = #tpu.dot_dimension_numbers<[1], [0], [0], [1], [0, 0, 1, 1], [], []>} : vector<64x128xf32>, vector<128x128xf32>, vector<64x128xf32> -> vector<64x128xf32>
    %c0_4 = arith.constant 0 : index
    %c0_5 = arith.constant 0 : index
    %6 = vector.load %arg4[%c0_4, %c0_5] : memref<1x128xf32, #tpu.memory_space<vmem>>, vector<1x128xf32>
    %7 = vector.broadcast %6 : vector<1x128xf32> to vector<64x128xf32>
    %8 = arith.addf %5, %7 : vector<64x128xf32>
    %c0_6 = arith.constant 0 : index
    %c0_7 = arith.constant 0 : index
    %9 = vector.load %arg5[%c0_6, %c0_7] : memref<64x128xf32, #tpu.memory_space<vmem>>, vector<64x128xf32>
    tpu.vector_store %arg5[%c0_6, %c0_7], %8 {strides = array<i32>} : memref<64x128xf32, #tpu.memory_space<vmem>>, vector<64x128xf32>,
    %c0_8 = arith.constant 0 : index
    %c0_9 = arith.constant 0 : index
    %10 = vector.load %arg3[%c0_8, %c0_9] : memref<128x128xf32, #tpu.memory_space<vmem>>, vector<128x128xf32>
    %c0_10 = arith.constant 0 : index
    %c0_11 = arith.constant 0 : index
    %11 = vector.load %arg6[%c0_10, %c0_11] : memref<8x128xf32, #tpu.memory_space<vmem>>, vector<8x128xf32>
    %c0_i32_12 = arith.constant 0 : i32
    %c8_i32 = arith.constant 8 : i32
    %12 = arith.muli %c0_i32_12, %c8_i32 : i32
    %13 = tpu.assume_multiple %12, 8 : i32
    %cst_13 = arith.constant dense<0.000000e+00> : vector<8x128xf32>
    %14 = tpu.matmul %11, %10, %cst_13 {dimension_numbers = #tpu.dot_dimension_numbers<[1], [0], [0], [1], [0, 0, 1, 1], [], []>} : vector<8x128xf32>, vector<128x128xf32>, vector<8x128xf32> -> vector<8x128xf32>
    %15 = arith.index_cast %13 : i32 to index
    %c0_14 = arith.constant 0 : index
    %16 = vector.load %arg5[%15, %c0_14] : memref<64x128xf32, #tpu.memory_space<vmem>>, vector<8x128xf32>
    %17 = arith.addf %14, %16 : vector<8x128xf32>
    %18 = math.tanh %17 : vector<8x128xf32>
    %19 = arith.index_cast %13 : i32 to index
    %c0_15 = arith.constant 0 : index
    %20 = vector.load %arg5[%19, %c0_15] : memref<64x128xf32, #tpu.memory_space<vmem>>, vector<8x128xf32>
    tpu.vector_store %arg5[%19, %c0_15], %18 {strides = array<i32>} : memref<64x128xf32, #tpu.memory_space<vmem>>, vector<8x128xf32>,
    %c1_i32 = arith.constant 1 : i32
    %c8_i32_16 = arith.constant 8 : i32
    %21 = arith.muli %c1_i32, %c8_i32_16 : i32
    %22 = tpu.assume_multiple %21, 8 : i32
    %cst_17 = arith.constant dense<0.000000e+00> : vector<8x128xf32>
    %23 = tpu.matmul %18, %10, %cst_17 {dimension_numbers = #tpu.dot_dimension_numbers<[1], [0], [0], [1], [0, 0, 1, 1], [], []>} : vector<8x128xf32>, vector<128x128xf32>, vector<8x128xf32> -> vector<8x128xf32>
    %24 = arith.index_cast %22 : i32 to index
    %c0_18 = arith.constant 0 : index
    %25 = vector.load %arg5[%24, %c0_18] : memref<64x128xf32, #tpu.memory_space<vmem>>, vector<8x128xf32>
    %26 = arith.addf %23, %25 : vector<8x128xf32>
    %27 = math.tanh %26 : vector<8x128xf32>
    %28 = arith.index_cast %22 : i32 to index
    %c0_19 = arith.constant 0 : index
    %29 = vector.load %arg5[%28, %c0_19] : memref<64x128xf32, #tpu.memory_space<vmem>>, vector<8x128xf32>
    tpu.vector_store %arg5[%28, %c0_19], %27 {strides = array<i32>} : memref<64x128xf32, #tpu.memory_space<vmem>>, vector<8x128xf32>,
    %c2_i32 = arith.constant 2 : i32
    %c8_i32_20 = arith.constant 8 : i32
    %30 = arith.muli %c2_i32, %c8_i32_20 : i32
    %31 = tpu.assume_multiple %30, 8 : i32
    %cst_21 = arith.constant dense<0.000000e+00> : vector<8x128xf32>
    %32 = tpu.matmul %27, %10, %cst_21 {dimension_numbers = #tpu.dot_dimension_numbers<[1], [0], [0], [1], [0, 0, 1, 1], [], []>} : vector<8x128xf32>, vector<128x128xf32>, vector<8x128xf32> -> vector<8x128xf32>
    %33 = arith.index_cast %31 : i32 to index
    %c0_22 = arith.constant 0 : index
    %34 = vector.load %arg5[%33, %c0_22] : memref<64x128xf32, #tpu.memory_space<vmem>>, vector<8x128xf32>
    %35 = arith.addf %32, %34 : vector<8x128xf32>
    %36 = math.tanh %35 : vector<8x128xf32>
    %37 = arith.index_cast %31 : i32 to index
    %c0_23 = arith.constant 0 : index
    %38 = vector.load %arg5[%37, %c0_23] : memref<64x128xf32, #tpu.memory_space<vmem>>, vector<8x128xf32>
    tpu.vector_store %arg5[%37, %c0_23], %36 {strides = array<i32>} : memref<64x128xf32, #tpu.memory_space<vmem>>, vector<8x128xf32>,
    %c3_i32 = arith.constant 3 : i32
    %c8_i32_24 = arith.constant 8 : i32
    %39 = arith.muli %c3_i32, %c8_i32_24 : i32
    %40 = tpu.assume_multiple %39, 8 : i32
    %cst_25 = arith.constant dense<0.000000e+00> : vector<8x128xf32>
    %41 = tpu.matmul %36, %10, %cst_25 {dimension_numbers = #tpu.dot_dimension_numbers<[1], [0], [0], [1], [0, 0, 1, 1], [], []>} : vector<8x128xf32>, vector<128x128xf32>, vector<8x128xf32> -> vector<8x128xf32>
    %42 = arith.index_cast %40 : i32 to index
    %c0_26 = arith.constant 0 : index
    %43 = vector.load %arg5[%42, %c0_26] : memref<64x128xf32, #tpu.memory_space<vmem>>, vector<8x128xf32>
    %44 = arith.addf %41, %43 : vector<8x128xf32>
    %45 = math.tanh %44 : vector<8x128xf32>
    %46 = arith.index_cast %40 : i32 to index
    %c0_27 = arith.constant 0 : index
    %47 = vector.load %arg5[%46, %c0_27] : memref<64x128xf32, #tpu.memory_space<vmem>>, vector<8x128xf32>
    tpu.vector_store %arg5[%46, %c0_27], %45 {strides = array<i32>} : memref<64x128xf32, #tpu.memory_space<vmem>>, vector<8x128xf32>,
    %c4_i32 = arith.constant 4 : i32
    %c8_i32_28 = arith.constant 8 : i32
    %48 = arith.muli %c4_i32, %c8_i32_28 : i32
    %49 = tpu.assume_multiple %48, 8 : i32
    %cst_29 = arith.constant dense<0.000000e+00> : vector<8x128xf32>
    %50 = tpu.matmul %45, %10, %cst_29 {dimension_numbers = #tpu.dot_dimension_numbers<[1], [0], [0], [1], [0, 0, 1, 1], [], []>} : vector<8x128xf32>, vector<128x128xf32>, vector<8x128xf32> -> vector<8x128xf32>
    %51 = arith.index_cast %49 : i32 to index
    %c0_30 = arith.constant 0 : index
    %52 = vector.load %arg5[%51, %c0_30] : memref<64x128xf32, #tpu.memory_space<vmem>>, vector<8x128xf32>
    %53 = arith.addf %50, %52 : vector<8x128xf32>
    %54 = math.tanh %53 : vector<8x128xf32>
    %55 = arith.index_cast %49 : i32 to index
    %c0_31 = arith.constant 0 : index
    %56 = vector.load %arg5[%55, %c0_31] : memref<64x128xf32, #tpu.memory_space<vmem>>, vector<8x128xf32>
    tpu.vector_store %arg5[%55, %c0_31], %54 {strides = array<i32>} : memref<64x128xf32, #tpu.memory_space<vmem>>, vector<8x128xf32>,
    %c5_i32 = arith.constant 5 : i32
    %c8_i32_32 = arith.constant 8 : i32
    %57 = arith.muli %c5_i32, %c8_i32_32 : i32
    %58 = tpu.assume_multiple %57, 8 : i32
    %cst_33 = arith.constant dense<0.000000e+00> : vector<8x128xf32>
    %59 = tpu.matmul %54, %10, %cst_33 {dimension_numbers = #tpu.dot_dimension_numbers<[1], [0], [0], [1], [0, 0, 1, 1], [], []>} : vector<8x128xf32>, vector<128x128xf32>, vector<8x128xf32> -> vector<8x128xf32>
    %60 = arith.index_cast %58 : i32 to index
    %c0_34 = arith.constant 0 : index
    %61 = vector.load %arg5[%60, %c0_34] : memref<64x128xf32, #tpu.memory_space<vmem>>, vector<8x128xf32>
    %62 = arith.addf %59, %61 : vector<8x128xf32>
    %63 = math.tanh %62 : vector<8x128xf32>
    %64 = arith.index_cast %58 : i32 to index
    %c0_35 = arith.constant 0 : index
    %65 = vector.load %arg5[%64, %c0_35] : memref<64x128xf32, #tpu.memory_space<vmem>>, vector<8x128xf32>
    tpu.vector_store %arg5[%64, %c0_35], %63 {strides = array<i32>} : memref<64x128xf32, #tpu.memory_space<vmem>>, vector<8x128xf32>,
    %c6_i32 = arith.constant 6 : i32
    %c8_i32_36 = arith.constant 8 : i32
    %66 = arith.muli %c6_i32, %c8_i32_36 : i32
    %67 = tpu.assume_multiple %66, 8 : i32
    %cst_37 = arith.constant dense<0.000000e+00> : vector<8x128xf32>
    %68 = tpu.matmul %63, %10, %cst_37 {dimension_numbers = #tpu.dot_dimension_numbers<[1], [0], [0], [1], [0, 0, 1, 1], [], []>} : vector<8x128xf32>, vector<128x128xf32>, vector<8x128xf32> -> vector<8x128xf32>
    %69 = arith.index_cast %67 : i32 to index
    %c0_38 = arith.constant 0 : index
    %70 = vector.load %arg5[%69, %c0_38] : memref<64x128xf32, #tpu.memory_space<vmem>>, vector<8x128xf32>
    %71 = arith.addf %68, %70 : vector<8x128xf32>
    %72 = math.tanh %71 : vector<8x128xf32>
    %73 = arith.index_cast %67 : i32 to index
    %c0_39 = arith.constant 0 : index
    %74 = vector.load %arg5[%73, %c0_39] : memref<64x128xf32, #tpu.memory_space<vmem>>, vector<8x128xf32>
    tpu.vector_store %arg5[%73, %c0_39], %72 {strides = array<i32>} : memref<64x128xf32, #tpu.memory_space<vmem>>, vector<8x128xf32>,
    %c7_i32 = arith.constant 7 : i32
    %c8_i32_40 = arith.constant 8 : i32
    %75 = arith.muli %c7_i32, %c8_i32_40 : i32
    %76 = tpu.assume_multiple %75, 8 : i32
    %cst_41 = arith.constant dense<0.000000e+00> : vector<8x128xf32>
    %77 = tpu.matmul %72, %10, %cst_41 {dimension_numbers = #tpu.dot_dimension_numbers<[1], [0], [0], [1], [0, 0, 1, 1], [], []>} : vector<8x128xf32>, vector<128x128xf32>, vector<8x128xf32> -> vector<8x128xf32>
    %78 = arith.index_cast %76 : i32 to index
    %c0_42 = arith.constant 0 : index
    %79 = vector.load %arg5[%78, %c0_42] : memref<64x128xf32, #tpu.memory_space<vmem>>, vector<8x128xf32>
    %80 = arith.addf %77, %79 : vector<8x128xf32>
    %81 = math.tanh %80 : vector<8x128xf32>
    %82 = arith.index_cast %76 : i32 to index
    %c0_43 = arith.constant 0 : index
    %83 = vector.load %arg5[%82, %c0_43] : memref<64x128xf32, #tpu.memory_space<vmem>>, vector<8x128xf32>
    tpu.vector_store %arg5[%82, %c0_43], %81 {strides = array<i32>} : memref<64x128xf32, #tpu.memory_space<vmem>>, vector<8x128xf32>,
    %c8_i32_44 = arith.constant 8 : i32
    %c0_45 = arith.constant 0 : index
    %c0_46 = arith.constant 0 : index
    %84 = vector.load %arg6[%c0_45, %c0_46] : memref<8x128xf32, #tpu.memory_space<vmem>>, vector<8x128xf32>
    tpu.vector_store %arg6[%c0_45, %c0_46], %81 {strides = array<i32>} : memref<8x128xf32, #tpu.memory_space<vmem>>, vector<8x128xf32>,
    return
  }
  func.func @transform_0(%arg0: i32) -> (i32, i32) {
    %c0_i32 = arith.constant 0 : i32
    %c0_i32_0 = arith.constant 0 : i32
    return %arg0, %c0_i32 : i32, i32
  }
  func.func @transform_1(%arg0: i32) -> (i32, i32) {
    %c0_i32 = arith.constant 0 : i32
    %c0_i32_0 = arith.constant 0 : i32
    %c0_i32_1 = arith.constant 0 : i32
    return %c0_i32, %c0_i32_0 : i32, i32
  }
  func.func @transform_2(%arg0: i32) -> (i32, i32) {
    %c0_i32 = arith.constant 0 : i32
    %c0_i32_0 = arith.constant 0 : i32
    %c0_i32_1 = arith.constant 0 : i32
    return %c0_i32, %c0_i32_0 : i32, i32
  }
  func.func @transform_3(%arg0: i32) -> (i32, i32) {
    %c0_i32 = arith.constant 0 : i32
    %c0_i32_0 = arith.constant 0 : i32
    %c0_i32_1 = arith.constant 0 : i32
    return %c0_i32, %c0_i32_0 : i32, i32
  }
  func.func @transform_4(%arg0: i32) -> (i32, i32) {
    %c0_i32 = arith.constant 0 : i32
    %c0_i32_0 = arith.constant 0 : i32
    return %arg0, %c0_i32 : i32, i32
  }
}

</mosaic_0001>

<llo_original>
// kernel: tpu_custom_call.1
$region0: #{tpu_custom_call.1}
  #allocation0 [shape = 'u32[]', space=smem, size = 0x4, offset = 0x4, fixed_abs, tag = 'smem constant byte address 0x4 - core index']
  #allocation1 [shape = 'u32[144,128]{1,0:T(1,128)}', space=vmem, size = 0x12000, scoped, tag = 'internal scratch']
  #allocation2 [shape = 'f32[8,128]{1,0:T(8,128)}', space=vmem, size = 0x1000, scoped, tag = 'scratch operand']
  %s0 = inlined_call_operand.hbm [shape: f32[64,128], index: 0, kind: input, shape index: {}]
  %s1 = inlined_call_operand.hbm [shape: f32[128,128], index: 1, kind: input, shape index: {}]
  %s2 = inlined_call_operand.hbm [shape: f32[128,128], index: 2, kind: input, shape index: {}]
  %s3 = inlined_call_operand.vmem [shape: f32[1,128], index: 3, kind: input, shape index: {}]
  %s4 = inlined_call_operand.hbm [shape: f32[64,128], index: 4, kind: output, shape index: {}]
  %s5 = sld [smem:[#allocation0]]
  $region42: #{tpu_custom_call.1} parent=0
    _
  %s7 = ssub.s32 1, %s5
  %s8 = scalar_select 0, %s7, %s5
  $region1: #{tpu_custom_call.1} parent=0
    #allocation3 [shape = 'u8[32768]{0}', space=vmem, size = 0x8000, scoped, tag = 'input window, operand 0, single buffered']
    #allocation4 [shape = 's32[1]{0}', space=sflag, size = 0x4, scoped, tag = 'scoped memory for tpu_custom_call.1']
    #allocation5 [shape = 's32[1]{0}', space=sflag, size = 0x4, scoped, tag = 'scoped memory for tpu_custom_call.1']
    #allocation6 [shape = 'u8[65536]{0}', space=vmem, size = 0x10000, scoped, tag = 'input window, operand 1, single buffered']
    #allocation7 [shape = 's32[1]{0}', space=sflag, size = 0x4, scoped, tag = 'scoped memory for tpu_custom_call.1']
    #allocation8 [shape = 'u8[65536]{0}', space=vmem, size = 0x10000, scoped, tag = 'input window, operand 2, single buffered']
    #allocation9 [shape = 'u8[32768]{0}', space=vmem, size = 0x8000, scoped, tag = 'output window, operand 0, single buffered']
    %9 = vsyncpa [#allocation4], 0
    %10 = vsyncpa [#allocation7], 0
    %11 = vsyncpa [#allocation5], 0
    // Predicated region
    $region2: #{tpu_custom_call.1} parent=1 // pred_check
      _
    $region3: #{tpu_custom_call.1} parent=1 // pred_check_branch
      %13 = sbr.rel (0) target = $region5
    $region4: #{tpu_custom_call.1} parent=1 // pred_region
      %s15 = ssub.s32 1024, 1024
      %16 = vsyncadd [#allocation4], %s15
      %s17 = sshll.u32 [#allocation3], 4
      %s18 = int_to_ptr.vmem [resolvable:$true] %s17
      %23 = dma.hbm_to_vmem [thread:$0]  %s0, 1024, %s18, [#allocation4], 128, 128, 8
    $region5: #{tpu_custom_call.1} parent=1 // pred_fallthru
      _
    // Predicated region
    $region6: #{tpu_custom_call.1} parent=1 // pred_check
      _
    $region7: #{tpu_custom_call.1} parent=1 // pred_check_branch
      %25 = sbr.rel (0) target = $region9
    $region8: #{tpu_custom_call.1} parent=1 // pred_region
      %s27 = ssub.s32 2048, 2048
      %28 = vsyncadd [#allocation7], %s27
      %s29 = sshll.u32 [#allocation6], 4
      %s30 = int_to_ptr.vmem [resolvable:$true] %s29
      %35 = dma.hbm_to_vmem [thread:$0]  %s1, 2048, %s30, [#allocation7], 128, 128, 8
    $region9: #{tpu_custom_call.1} parent=1 // pred_fallthru
      _
    // Predicated region
    $region10: #{tpu_custom_call.1} parent=1 // pred_check
      _
    $region11: #{tpu_custom_call.1} parent=1 // pred_check_branch
      %37 = sbr.rel (0) target = $region13
    $region12: #{tpu_custom_call.1} parent=1 // pred_region
      %s39 = ssub.s32 2048, 2048
      %40 = vsyncadd [#allocation7], %s39
      %s41 = sshll.u32 [#allocation8], 4
      %s42 = int_to_ptr.vmem [resolvable:$true] %s41
      %47 = dma.hbm_to_vmem [thread:$0]  %s2, 2048, %s42, [#allocation7], 128, 128, 8
    $region13: #{tpu_custom_call.1} parent=1 // pred_fallthru
      _
    // Predicated region
    $region14: #{tpu_custom_call.1} parent=1 // pred_check
      _
    $region15: #{tpu_custom_call.1} parent=1 // pred_check_branch
      %49 = sbr.rel (0) target = $region17
    $region16: #{tpu_custom_call.1} parent=1 // pred_region
      _
    $region17: #{tpu_custom_call.1} parent=1 // pred_fallthru
      _
    // Predicated region
    $region18: #{tpu_custom_call.1} parent=1 // pred_check
      _
    $region19: #{tpu_custom_call.1} parent=1 // pred_check_branch
      %51 = sbr.rel (0) target = $region21
    $region20: #{tpu_custom_call.1} parent=1 // pred_region
      %52 = dma.done [#allocation4], 1024
    $region21: #{tpu_custom_call.1} parent=1 // pred_fallthru
      _
    // Predicated region
    $region22: #{tpu_custom_call.1} parent=1 // pred_check
      _
    $region23: #{tpu_custom_call.1} parent=1 // pred_check_branch
      %54 = sbr.rel (0) target = $region25
    $region24: #{tpu_custom_call.1} parent=1 // pred_region
      %55 = dma.done [#allocation7], 2048
    $region25: #{tpu_custom_call.1} parent=1 // pred_fallthru
      _
    // Predicated region
    $region26: #{tpu_custom_call.1} parent=1 // pred_check
      _
    $region27: #{tpu_custom_call.1} parent=1 // pred_check_branch
      %57 = sbr.rel (0) target = $region29
    $region28: #{tpu_custom_call.1} parent=1 // pred_region
      %58 = dma.done [#allocation7], 2048
    $region29: #{tpu_custom_call.1} parent=1 // pred_fallthru
      _
    %p59 = scmp.eq.s32.totalorder 0, 0
    // Predicated region
    $region30: #{tpu_custom_call.1} parent=1 // pred_check
      %p60 = pneg %p59
    $region31: #{tpu_custom_call.1} parent=1 // pred_check_branch
      %62 = sbr.rel (%p60) target = $region33
    $region32: #{tpu_custom_call.1} parent=1 // pred_region
      %63 = vst [vmem:[#allocation2] sm:$0xff] 0.0
    $region33: #{tpu_custom_call.1} parent=1 // pred_fallthru
      _
    %v64 = vld [vmem:[#allocation3] sm:$0xff]
    %v65 = vld [vmem:[#allocation3 + $0x8] sm:$0xff]
    %v66 = vld [vmem:[#allocation3 + $0x10] sm:$0xff]
    %v67 = vld [vmem:[#allocation3 + $0x18] sm:$0xff]
    %v68 = vld [vmem:[#allocation3 + $0x20] sm:$0xff]
    %v69 = vld [vmem:[#allocation3 + $0x28] sm:$0xff]
    %v70 = vld [vmem:[#allocation3 + $0x30] sm:$0xff]
    %v71 = vld [vmem:[#allocation3 + $0x38] sm:$0xff]
    %v72 = vld [vmem:[#allocation6] sm:$0xff]
    %v73 = vld [vmem:[#allocation6 + $0x8] sm:$0xff]
    %v74 = vld [vmem:[#allocation6 + $0x10] sm:$0xff]
    %v75 = vld [vmem:[#allocation6 + $0x18] sm:$0xff]
    %v76 = vld [vmem:[#allocation6 + $0x20] sm:$0xff]
    %v77 = vld [vmem:[#allocation6 + $0x28] sm:$0xff]
    %v78 = vld [vmem:[#allocation6 + $0x30] sm:$0xff]
    %v79 = vld [vmem:[#allocation6 + $0x38] sm:$0xff]
    %v80 = vld [vmem:[#allocation6 + $0x40] sm:$0xff]
    %v81 = vld [vmem:[#allocation6 + $0x48] sm:$0xff]
    %v82 = vld [vmem:[#allocation6 + $0x50] sm:$0xff]
    %v83 = vld [vmem:[#allocation6 + $0x58] sm:$0xff]
    %v84 = vld [vmem:[#allocation6 + $0x60] sm:$0xff]
    %v85 = vld [vmem:[#allocation6 + $0x68] sm:$0xff]
    %v86 = vld [vmem:[#allocation6 + $0x70] sm:$0xff]
    %v87 = vld [vmem:[#allocation6 + $0x78] sm:$0xff]
    %v88 = vld [vmem:[%s3] sm:$0x1]
    %v90 = vlaneseq
    %v91 = vshrl.u32 %v90, 7
    %v92 = vsub.s32 0, %v91
    %v93 = vrot.slane %v88, %v92
    %95 = vmatprep.subr.mxu0 0.0
    %96 = vmatpush1.msra.mxu0 %v87
    %97 = vmatprep.subr.mxu0 0.0
    %98 = vmatpush1.msra.mxu0 %v86
    %99 = vmatprep.subr.mxu0 0.0
    %100 = vmatpush1.msra.mxu0 %v85
    %101 = vmatprep.subr.mxu0 0.0
    %102 = vmatpush1.msra.mxu0 %v84
    %103 = vmatprep.subr.mxu0 0.0
    %104 = vmatpush1.msra.mxu0 %v83
    %105 = vmatprep.subr.mxu0 0.0
    %106 = vmatpush1.msra.mxu0 %v82
    %107 = vmatprep.subr.mxu0 0.0
    %108 = vmatpush1.msra.mxu0 %v81
    %109 = vmatprep.subr.mxu0 0.0
    %110 = vmatpush1.msra.mxu0 %v80
    %111 = vmatprep.subr.mxu0 0.0
    %112 = vmatpush1.msra.mxu0 %v79
    %113 = vmatprep.subr.mxu0 0.0
    %114 = vmatpush1.msra.mxu0 %v78
    %115 = vmatprep.subr.mxu0 0.0
    %116 = vmatpush1.msra.mxu0 %v77
    %117 = vmatprep.subr.mxu0 0.0
    %118 = vmatpush1.msra.mxu0 %v76
    %119 = vmatprep.subr.mxu0 0.0
    %120 = vmatpush1.msra.mxu0 %v75
    %121 = vmatprep.subr.mxu0 0.0
    %122 = vmatpush1.msra.mxu0 %v74
    %123 = vmatprep.subr.mxu0 0.0
    %124 = vmatpush1.msra.mxu0 %v73
    %125 = vmatprep.subr.mxu0 0.0
    %126 = vmatpush1.msra.mxu0 %v72
    %127 = vmatprep.subr.mxu0 0.0
    %128 = vmatpush2.msra.mxu0 0.0
    %129 = vmatprep.subr.mxu0 0.0
    %130 = vmatpush2.msra.mxu0 0.0
    %131 = vmatprep.subr.mxu0 0.0
    %132 = vmatpush2.msra.mxu0 0.0
    %133 = vmatprep.subr.mxu0 0.0
    %134 = vmatpush2.msra.mxu0 0.0
    %135 = vmatprep.subr.mxu0 0.0
    %136 = vmatpush2.msra.mxu0 0.0
    %137 = vmatprep.subr.mxu0 0.0
    %138 = vmatpush2.msra.mxu0 0.0
    %139 = vmatprep.subr.mxu0 0.0
    %140 = vmatpush2.msra.mxu0 0.0
    %141 = vmatprep.subr.mxu0 0.0
    %142 = vmatpush2.msra.mxu0 0.0
    %143 = vmatprep.subr.mxu0 0.0
    %144 = vmatpush2.msra.mxu0 0.0
    %145 = vmatprep.subr.mxu0 0.0
    %146 = vmatpush2.msra.mxu0 0.0
    %147 = vmatprep.subr.mxu0 0.0
    %148 = vmatpush2.msra.mxu0 0.0
    %149 = vmatprep.subr.mxu0 0.0
    %150 = vmatpush2.msra.mxu0 0.0
    %151 = vmatprep.subr.mxu0 0.0
    %152 = vmatpush2.msra.mxu0 0.0
    %153 = vmatprep.subr.mxu0 0.0
    %154 = vmatpush2.msra.mxu0 0.0
    %155 = vmatprep.subr.mxu0 0.0
    %156 = vmatpush2.msra.mxu0 0.0
    %157 = vmatprep.subr.mxu0 0.0
    %158 = vmatpush2.msra.mxu0 0.0
    %159 = vmatprep.mubr.f32.mxu0 0.0
    %160 = vmatmul.mubr.f32.gmra.mxu0 %v64
    %v161 = vpop.f32.mrf.mxu0
    %v162 = vadd.f32 %v93, %v161
    %v163 = vpop.f32.mrf.mxu0
    %164 = vmatprep.mubr.f32.mxu0 0.0
    %165 = vmatmul.mubr.f32.gmra.mxu0 %v65
    %v166 = vpop.f32.mrf.mxu0
    %v167 = vadd.f32 %v93, %v166
    %v168 = vpop.f32.mrf.mxu0
    %169 = vmatprep.mubr.f32.mxu0 0.0
    %170 = vmatmul.mubr.f32.gmra.mxu0 %v66
    %v171 = vpop.f32.mrf.mxu0
    %v172 = vadd.f32 %v93, %v171
    %v173 = vpop.f32.mrf.mxu0
    %174 = vmatprep.mubr.f32.mxu0 0.0
    %175 = vmatmul.mubr.f32.gmra.mxu0 %v67
    %v176 = vpop.f32.mrf.mxu0
    %v177 = vadd.f32 %v93, %v176
    %v178 = vpop.f32.mrf.mxu0
    %179 = vmatprep.mubr.f32.mxu0 0.0
    %180 = vmatmul.mubr.f32.gmra.mxu0 %v68
    %v181 = vpop.f32.mrf.mxu0
    %v182 = vadd.f32 %v93, %v181
    %v183 = vpop.f32.mrf.mxu0
    %184 = vmatprep.mubr.f32.mxu0 0.0
    %185 = vmatmul.mubr.f32.gmra.mxu0 %v69
    %v186 = vpop.f32.mrf.mxu0
    %v187 = vadd.f32 %v93, %v186
    %v188 = vpop.f32.mrf.mxu0
    %189 = vmatprep.mubr.f32.mxu0 0.0
    %190 = vmatmul.mubr.f32.gmra.mxu0 %v70
    %v191 = vpop.f32.mrf.mxu0
    %v192 = vadd.f32 %v93, %v191
    %v193 = vpop.f32.mrf.mxu0
    %194 = vmatprep.mubr.f32.mxu0 0.0
    %195 = vmatmul.mubr.f32.gmra.mxu0 %v71
    %v196 = vpop.f32.mrf.mxu0
    %v197 = vadd.f32 %v93, %v196
    %v198 = vpop.f32.mrf.mxu0
    %199 = vdwg.mxu0
    %200 = vst [vmem:[#allocation9] sm:$0xff] %v162
    %201 = vst [vmem:[#allocation9 + $0x8] sm:$0xff] %v167
    %202 = vst [vmem:[#allocation9 + $0x10] sm:$0xff] %v172
    %203 = vst [vmem:[#allocation9 + $0x18] sm:$0xff] %v177
    %204 = vst [vmem:[#allocation9 + $0x20] sm:$0xff] %v182
    %205 = vst [vmem:[#allocation9 + $0x28] sm:$0xff] %v187
    %206 = vst [vmem:[#allocation9 + $0x30] sm:$0xff] %v192
    %207 = vst [vmem:[#allocation9 + $0x38] sm:$0xff] %v197
    %v208 = vld [vmem:[#allocation8] sm:$0xff]
    %v209 = vld [vmem:[#allocation8 + $0x8] sm:$0xff]
    %v210 = vld [vmem:[#allocation8 + $0x10] sm:$0xff]
    %v211 = vld [vmem:[#allocation8 + $0x18] sm:$0xff]
    %v212 = vld [vmem:[#allocation8 + $0x20] sm:$0xff]
    %v213 = vld [vmem:[#allocation8 + $0x28] sm:$0xff]
    %v214 = vld [vmem:[#allocation8 + $0x30] sm:$0xff]
    %v215 = vld [vmem:[#allocation8 + $0x38] sm:$0xff]
    %v216 = vld [vmem:[#allocation8 + $0x40] sm:$0xff]
    %v217 = vld [vmem:[#allocation8 + $0x48] sm:$0xff]
    %v218 = vld [vmem:[#allocation8 + $0x50] sm:$0xff]
    %v219 = vld [vmem:[#allocation8 + $0x58] sm:$0xff]
    %v220 = vld [vmem:[#allocation8 + $0x60] sm:$0xff]
    %v221 = vld [vmem:[#allocation8 + $0x68] sm:$0xff]
    %v222 = vld [vmem:[#allocation8 + $0x70] sm:$0xff]
    %v223 = vld [vmem:[#allocation8 + $0x78] sm:$0xff]
    %v224 = vld [vmem:[#allocation2] sm:$0xff]
    %v225 = vld [vmem:[#allocation9] sm:$0xff]
    %226 = vmatprep.subr.mxu0 0.0
    %227 = vmatpush1.msra.mxu0 %v223
    %228 = vmatprep.subr.mxu0 0.0
    %229 = vmatpush1.msra.mxu0 %v222
    %230 = vmatprep.subr.mxu0 0.0
    %231 = vmatpush1.msra.mxu0 %v221
    %232 = vmatprep.subr.mxu0 0.0
    %233 = vmatpush1.msra.mxu0 %v220
    %234 = vmatprep.subr.mxu0 0.0
    %235 = vmatpush1.msra.mxu0 %v219
    %236 = vmatprep.subr.mxu0 0.0
    %237 = vmatpush1.msra.mxu0 %v218
    %238 = vmatprep.subr.mxu0 0.0
    %239 = vmatpush1.msra.mxu0 %v217
    %240 = vmatprep.subr.mxu0 0.0
    %241 = vmatpush1.msra.mxu0 %v216
    %242 = vmatprep.subr.mxu0 0.0
    %243 = vmatpush1.msra.mxu0 %v215
    %244 = vmatprep.subr.mxu0 0.0
    %245 = vmatpush1.msra.mxu0 %v214
    %246 = vmatprep.subr.mxu0 0.0
    %247 = vmatpush1.msra.mxu0 %v213
    %248 = vmatprep.subr.mxu0 0.0
    %249 = vmatpush1.msra.mxu0 %v212
    %250 = vmatprep.subr.mxu0 0.0
    %251 = vmatpush1.msra.mxu0 %v211
    %252 = vmatprep.subr.mxu0 0.0
    %253 = vmatpush1.msra.mxu0 %v210
    %254 = vmatprep.subr.mxu0 0.0
    %255 = vmatpush1.msra.mxu0 %v209
    %256 = vmatprep.subr.mxu0 0.0
    %257 = vmatpush1.msra.mxu0 %v208
    %258 = vmatprep.subr.mxu0 0.0
    %259 = vmatpush2.msra.mxu0 0.0
    %260 = vmatprep.subr.mxu0 0.0
    %261 = vmatpush2.msra.mxu0 0.0
    %262 = vmatprep.subr.mxu0 0.0
    %263 = vmatpush2.msra.mxu0 0.0
    %264 = vmatprep.subr.mxu0 0.0
    %265 = vmatpush2.msra.mxu0 0.0
    %266 = vmatprep.subr.mxu0 0.0
    %267 = vmatpush2.msra.mxu0 0.0
    %268 = vmatprep.subr.mxu0 0.0
    %269 = vmatpush2.msra.mxu0 0.0
    %270 = vmatprep.subr.mxu0 0.0
    %271 = vmatpush2.msra.mxu0 0.0
    %272 = vmatprep.subr.mxu0 0.0
    %273 = vmatpush2.msra.mxu0 0.0
    %274 = vmatprep.subr.mxu0 0.0
    %275 = vmatpush2.msra.mxu0 0.0
    %276 = vmatprep.subr.mxu0 0.0
    %277 = vmatpush2.msra.mxu0 0.0
    %278 = vmatprep.subr.mxu0 0.0
    %279 = vmatpush2.msra.mxu0 0.0
    %280 = vmatprep.subr.mxu0 0.0
    %281 = vmatpush2.msra.mxu0 0.0
    %282 = vmatprep.subr.mxu0 0.0
    %283 = vmatpush2.msra.mxu0 0.0
    %284 = vmatprep.subr.mxu0 0.0
    %285 = vmatpush2.msra.mxu0 0.0
    %286 = vmatprep.subr.mxu0 0.0
    %287 = vmatpush2.msra.mxu0 0.0
    %288 = vmatprep.subr.mxu0 0.0
    %289 = vmatpush2.msra.mxu0 0.0
    %290 = vmatprep.mubr.f32.mxu0 0.0
    %291 = vmatmul.mubr.f32.gmra.mxu0 %v224
    %v292 = vpop.f32.mrf.mxu0
    %v293 = vadd.f32 %v225, %v292
    %v294 = vpop.f32.mrf.mxu0
    %295 = vdwg.mxu0
    %v296 = vtanh.pop %v293
    %297 = vst [vmem:[#allocation9] sm:$0xff] %v296
    %s298 = scalar_lea.vmem [#allocation9], 8
    %v299 = vld [vmem:[%s298] sm:$0xff]
    %300 = vmatprep.subr.mxu0 0.0
    %301 = vmatpush1.msra.mxu0 %v223
    %302 = vmatprep.subr.mxu0 0.0
    %303 = vmatpush1.msra.mxu0 %v222
    %304 = vmatprep.subr.mxu0 0.0
    %305 = vmatpush1.msra.mxu0 %v221
    %306 = vmatprep.subr.mxu0 0.0
    %307 = vmatpush1.msra.mxu0 %v220
    %308 = vmatprep.subr.mxu0 0.0
    %309 = vmatpush1.msra.mxu0 %v219
    %310 = vmatprep.subr.mxu0 0.0
    %311 = vmatpush1.msra.mxu0 %v218
    %312 = vmatprep.subr.mxu0 0.0
    %313 = vmatpush1.msra.mxu0 %v217
    %314 = vmatprep.subr.mxu0 0.0
    %315 = vmatpush1.msra.mxu0 %v216
    %316 = vmatprep.subr.mxu0 0.0
    %317 = vmatpush1.msra.mxu0 %v215
    %318 = vmatprep.subr.mxu0 0.0
    %319 = vmatpush1.msra.mxu0 %v214
    %320 = vmatprep.subr.mxu0 0.0
    %321 = vmatpush1.msra.mxu0 %v213
    %322 = vmatprep.subr.mxu0 0.0
    %323 = vmatpush1.msra.mxu0 %v212
    %324 = vmatprep.subr.mxu0 0.0
    %325 = vmatpush1.msra.mxu0 %v211
    %326 = vmatprep.subr.mxu0 0.0
    %327 = vmatpush1.msra.mxu0 %v210
    %328 = vmatprep.subr.mxu0 0.0
    %329 = vmatpush1.msra.mxu0 %v209
    %330 = vmatprep.subr.mxu0 0.0
    %331 = vmatpush1.msra.mxu0 %v208
    %332 = vmatprep.subr.mxu0 0.0
    %333 = vmatpush2.msra.mxu0 0.0
    %334 = vmatprep.subr.mxu0 0.0
    %335 = vmatpush2.msra.mxu0 0.0
    %336 = vmatprep.subr.mxu0 0.0
    %337 = vmatpush2.msra.mxu0 0.0
    %338 = vmatprep.subr.mxu0 0.0
    %339 = vmatpush2.msra.mxu0 0.0
    %340 = vmatprep.subr.mxu0 0.0
    %341 = vmatpush2.msra.mxu0 0.0
    %342 = vmatprep.subr.mxu0 0.0
    %343 = vmatpush2.msra.mxu0 0.0
    %344 = vmatprep.subr.mxu0 0.0
    %345 = vmatpush2.msra.mxu0 0.0
    %346 = vmatprep.subr.mxu0 0.0
    %347 = vmatpush2.msra.mxu0 0.0
    %348 = vmatprep.subr.mxu0 0.0
    %349 = vmatpush2.msra.mxu0 0.0
    %350 = vmatprep.subr.mxu0 0.0
    %351 = vmatpush2.msra.mxu0 0.0
    %352 = vmatprep.subr.mxu0 0.0
    %353 = vmatpush2.msra.mxu0 0.0
    %354 = vmatprep.subr.mxu0 0.0
    %355 = vmatpush2.msra.mxu0 0.0
    %356 = vmatprep.subr.mxu0 0.0
    %357 = vmatpush2.msra.mxu0 0.0
    %358 = vmatprep.subr.mxu0 0.0
    %359 = vmatpush2.msra.mxu0 0.0
    %360 = vmatprep.subr.mxu0 0.0
    %361 = vmatpush2.msra.mxu0 0.0
    %362 = vmatprep.subr.mxu0 0.0
    %363 = vmatpush2.msra.mxu0 0.0
    %364 = vmatprep.mubr.f32.mxu0 0.0
    %365 = vmatmul.mubr.f32.gmra.mxu0 %v296
    %v366 = vpop.f32.mrf.mxu0
    %v367 = vadd.f32 %v299, %v366
    %v368 = vpop.f32.mrf.mxu0
    %369 = vdwg.mxu0
    %v370 = vtanh.pop %v367
    %371 = vst [vmem:[%s298] sm:$0xff] %v370
    %s372 = scalar_lea.vmem [#allocation9], 16
    %v373 = vld [vmem:[%s372] sm:$0xff]
    %374 = vmatprep.subr.mxu0 0.0
    %375 = vmatpush1.msra.mxu0 %v223
    %376 = vmatprep.subr.mxu0 0.0
    %377 = vmatpush1.msra.mxu0 %v222
    %378 = vmatprep.subr.mxu0 0.0
    %379 = vmatpush1.msra.mxu0 %v221
    %380 = vmatprep.subr.mxu0 0.0
    %381 = vmatpush1.msra.mxu0 %v220
    %382 = vmatprep.subr.mxu0 0.0
    %383 = vmatpush1.msra.mxu0 %v219
    %384 = vmatprep.subr.mxu0 0.0
    %385 = vmatpush1.msra.mxu0 %v218
    %386 = vmatprep.subr.mxu0 0.0
    %387 = vmatpush1.msra.mxu0 %v217
    %388 = vmatprep.subr.mxu0 0.0
    %389 = vmatpush1.msra.mxu0 %v216
    %390 = vmatprep.subr.mxu0 0.0
    %391 = vmatpush1.msra.mxu0 %v215
    %392 = vmatprep.subr.mxu0 0.0
    %393 = vmatpush1.msra.mxu0 %v214
    %394 = vmatprep.subr.mxu0 0.0
    %395 = vmatpush1.msra.mxu0 %v213
    %396 = vmatprep.subr.mxu0 0.0
    %397 = vmatpush1.msra.mxu0 %v212
    %398 = vmatprep.subr.mxu0 0.0
    %399 = vmatpush1.msra.mxu0 %v211
    %400 = vmatprep.subr.mxu0 0.0
    %401 = vmatpush1.msra.mxu0 %v210
    %402 = vmatprep.subr.mxu0 0.0
    %403 = vmatpush1.msra.mxu0 %v209
    %404 = vmatprep.subr.mxu0 0.0
    %405 = vmatpush1.msra.mxu0 %v208
    %406 = vmatprep.subr.mxu0 0.0
    %407 = vmatpush2.msra.mxu0 0.0
    %408 = vmatprep.subr.mxu0 0.0
    %409 = vmatpush2.msra.mxu0 0.0
    %410 = vmatprep.subr.mxu0 0.0
    %411 = vmatpush2.msra.mxu0 0.0
    %412 = vmatprep.subr.mxu0 0.0
    %413 = vmatpush2.msra.mxu0 0.0
    %414 = vmatprep.subr.mxu0 0.0
    %415 = vmatpush2.msra.mxu0 0.0
    %416 = vmatprep.subr.mxu0 0.0
    %417 = vmatpush2.msra.mxu0 0.0
    %418 = vmatprep.subr.mxu0 0.0
    %419 = vmatpush2.msra.mxu0 0.0
    %420 = vmatprep.subr.mxu0 0.0
    %421 = vmatpush2.msra.mxu0 0.0
    %422 = vmatprep.subr.mxu0 0.0
    %423 = vmatpush2.msra.mxu0 0.0
    %424 = vmatprep.subr.mxu0 0.0
    %425 = vmatpush2.msra.mxu0 0.0
    %426 = vmatprep.subr.mxu0 0.0
    %427 = vmatpush2.msra.mxu0 0.0
    %428 = vmatprep.subr.mxu0 0.0
    %429 = vmatpush2.msra.mxu0 0.0
    %430 = vmatprep.subr.mxu0 0.0
    %431 = vmatpush2.msra.mxu0 0.0
    %432 = vmatprep.subr.mxu0 0.0
    %433 = vmatpush2.msra.mxu0 0.0
    %434 = vmatprep.subr.mxu0 0.0
    %435 = vmatpush2.msra.mxu0 0.0
    %436 = vmatprep.subr.mxu0 0.0
    %437 = vmatpush2.msra.mxu0 0.0
    %438 = vmatprep.mubr.f32.mxu0 0.0
    %439 = vmatmul.mubr.f32.gmra.mxu0 %v370
    %v440 = vpop.f32.mrf.mxu0
    %v441 = vadd.f32 %v373, %v440
    %v442 = vpop.f32.mrf.mxu0
    %443 = vdwg.mxu0
    %v444 = vtanh.pop %v441
    %445 = vst [vmem:[%s372] sm:$0xff] %v444
    %s446 = scalar_lea.vmem [#allocation9], 24
    %v447 = vld [vmem:[%s446] sm:$0xff]
    %448 = vmatprep.subr.mxu0 0.0
    %449 = vmatpush1.msra.mxu0 %v223
    %450 = vmatprep.subr.mxu0 0.0
    %451 = vmatpush1.msra.mxu0 %v222
    %452 = vmatprep.subr.mxu0 0.0
    %453 = vmatpush1.msra.mxu0 %v221
    %454 = vmatprep.subr.mxu0 0.0
    %455 = vmatpush1.msra.mxu0 %v220
    %456 = vmatprep.subr.mxu0 0.0
    %457 = vmatpush1.msra.mxu0 %v219
    %458 = vmatprep.subr.mxu0 0.0
    %459 = vmatpush1.msra.mxu0 %v218
    %460 = vmatprep.subr.mxu0 0.0
    %461 = vmatpush1.msra.mxu0 %v217
    %462 = vmatprep.subr.mxu0 0.0
    %463 = vmatpush1.msra.mxu0 %v216
    %464 = vmatprep.subr.mxu0 0.0
    %465 = vmatpush1.msra.mxu0 %v215
    %466 = vmatprep.subr.mxu0 0.0
    %467 = vmatpush1.msra.mxu0 %v214
    %468 = vmatprep.subr.mxu0 0.0
    %469 = vmatpush1.msra.mxu0 %v213
    %470 = vmatprep.subr.mxu0 0.0
    %471 = vmatpush1.msra.mxu0 %v212
    %472 = vmatprep.subr.mxu0 0.0
    %473 = vmatpush1.msra.mxu0 %v211
    %474 = vmatprep.subr.mxu0 0.0
    %475 = vmatpush1.msra.mxu0 %v210
    %476 = vmatprep.subr.mxu0 0.0
    %477 = vmatpush1.msra.mxu0 %v209
    %478 = vmatprep.subr.mxu0 0.0
    %479 = vmatpush1.msra.mxu0 %v208
    %480 = vmatprep.subr.mxu0 0.0
    %481 = vmatpush2.msra.mxu0 0.0
    %482 = vmatprep.subr.mxu0 0.0
    %483 = vmatpush2.msra.mxu0 0.0
    %484 = vmatprep.subr.mxu0 0.0
    %485 = vmatpush2.msra.mxu0 0.0
    %486 = vmatprep.subr.mxu0 0.0
    %487 = vmatpush2.msra.mxu0 0.0
    %488 = vmatprep.subr.mxu0 0.0
    %489 = vmatpush2.msra.mxu0 0.0
    %490 = vmatprep.subr.mxu0 0.0
    %491 = vmatpush2.msra.mxu0 0.0
    %492 = vmatprep.subr.mxu0 0.0
    %493 = vmatpush2.msra.mxu0 0.0
    %494 = vmatprep.subr.mxu0 0.0
    %495 = vmatpush2.msra.mxu0 0.0
    %496 = vmatprep.subr.mxu0 0.0
    %497 = vmatpush2.msra.mxu0 0.0
    %498 = vmatprep.subr.mxu0 0.0
    %499 = vmatpush2.msra.mxu0 0.0
    %500 = vmatprep.subr.mxu0 0.0
    %501 = vmatpush2.msra.mxu0 0.0
    %502 = vmatprep.subr.mxu0 0.0
    %503 = vmatpush2.msra.mxu0 0.0
    %504 = vmatprep.subr.mxu0 0.0
    %505 = vmatpush2.msra.mxu0 0.0
    %506 = vmatprep.subr.mxu0 0.0
    %507 = vmatpush2.msra.mxu0 0.0
    %508 = vmatprep.subr.mxu0 0.0
    %509 = vmatpush2.msra.mxu0 0.0
    %510 = vmatprep.subr.mxu0 0.0
    %511 = vmatpush2.msra.mxu0 0.0
    %512 = vmatprep.mubr.f32.mxu0 0.0
    %513 = vmatmul.mubr.f32.gmra.mxu0 %v444
    %v514 = vpop.f32.mrf.mxu0
    %v515 = vadd.f32 %v447, %v514
    %v516 = vpop.f32.mrf.mxu0
    %517 = vdwg.mxu0
    %v518 = vtanh.pop %v515
    %519 = vst [vmem:[%s446] sm:$0xff] %v518
    %s520 = scalar_lea.vmem [#allocation9], 32
    %v521 = vld [vmem:[%s520] sm:$0xff]
    %522 = vmatprep.subr.mxu0 0.0
    %523 = vmatpush1.msra.mxu0 %v223
    %524 = vmatprep.subr.mxu0 0.0
    %525 = vmatpush1.msra.mxu0 %v222
    %526 = vmatprep.subr.mxu0 0.0
    %527 = vmatpush1.msra.mxu0 %v221
    %528 = vmatprep.subr.mxu0 0.0
    %529 = vmatpush1.msra.mxu0 %v220
    %530 = vmatprep.subr.mxu0 0.0
    %531 = vmatpush1.msra.mxu0 %v219
    %532 = vmatprep.subr.mxu0 0.0
    %533 = vmatpush1.msra.mxu0 %v218
    %534 = vmatprep.subr.mxu0 0.0
    %535 = vmatpush1.msra.mxu0 %v217
    %536 = vmatprep.subr.mxu0 0.0
    %537 = vmatpush1.msra.mxu0 %v216
    %538 = vmatprep.subr.mxu0 0.0
    %539 = vmatpush1.msra.mxu0 %v215
    %540 = vmatprep.subr.mxu0 0.0
    %541 = vmatpush1.msra.mxu0 %v214
    %542 = vmatprep.subr.mxu0 0.0
    %543 = vmatpush1.msra.mxu0 %v213
    %544 = vmatprep.subr.mxu0 0.0
    %545 = vmatpush1.msra.mxu0 %v212
    %546 = vmatprep.subr.mxu0 0.0
    %547 = vmatpush1.msra.mxu0 %v211
    %548 = vmatprep.subr.mxu0 0.0
    %549 = vmatpush1.msra.mxu0 %v210
    %550 = vmatprep.subr.mxu0 0.0
    %551 = vmatpush1.msra.mxu0 %v209
    %552 = vmatprep.subr.mxu0 0.0
    %553 = vmatpush1.msra.mxu0 %v208
    %554 = vmatprep.subr.mxu0 0.0
    %555 = vmatpush2.msra.mxu0 0.0
    %556 = vmatprep.subr.mxu0 0.0
    %557 = vmatpush2.msra.mxu0 0.0
    %558 = vmatprep.subr.mxu0 0.0
    %559 = vmatpush2.msra.mxu0 0.0
    %560 = vmatprep.subr.mxu0 0.0
    %561 = vmatpush2.msra.mxu0 0.0
    %562 = vmatprep.subr.mxu0 0.0
    %563 = vmatpush2.msra.mxu0 0.0
    %564 = vmatprep.subr.mxu0 0.0
    %565 = vmatpush2.msra.mxu0 0.0
    %566 = vmatprep.subr.mxu0 0.0
    %567 = vmatpush2.msra.mxu0 0.0
    %568 = vmatprep.subr.mxu0 0.0
    %569 = vmatpush2.msra.mxu0 0.0
    %570 = vmatprep.subr.mxu0 0.0
    %571 = vmatpush2.msra.mxu0 0.0
    %572 = vmatprep.subr.mxu0 0.0
    %573 = vmatpush2.msra.mxu0 0.0
    %574 = vmatprep.subr.mxu0 0.0
    %575 = vmatpush2.msra.mxu0 0.0
    %576 = vmatprep.subr.mxu0 0.0
    %577 = vmatpush2.msra.mxu0 0.0
    %578 = vmatprep.subr.mxu0 0.0
    %579 = vmatpush2.msra.mxu0 0.0
    %580 = vmatprep.subr.mxu0 0.0
    %581 = vmatpush2.msra.mxu0 0.0
    %582 = vmatprep.subr.mxu0 0.0
    %583 = vmatpush2.msra.mxu0 0.0
    %584 = vmatprep.subr.mxu0 0.0
    %585 = vmatpush2.msra.mxu0 0.0
    %586 = vmatprep.mubr.f32.mxu0 0.0
    %587 = vmatmul.mubr.f32.gmra.mxu0 %v518
    %v588 = vpop.f32.mrf.mxu0
    %v589 = vadd.f32 %v521, %v588
    %v590 = vpop.f32.mrf.mxu0
    %591 = vdwg.mxu0
    %v592 = vtanh.pop %v589
    %593 = vst [vmem:[%s520] sm:$0xff] %v592
    %s594 = scalar_lea.vmem [#allocation9], 40
    %v595 = vld [vmem:[%s594] sm:$0xff]
    %596 = vmatprep.subr.mxu0 0.0
    %597 = vmatpush1.msra.mxu0 %v223
    %598 = vmatprep.subr.mxu0 0.0
    %599 = vmatpush1.msra.mxu0 %v222
    %600 = vmatprep.subr.mxu0 0.0
    %601 = vmatpush1.msra.mxu0 %v221
    %602 = vmatprep.subr.mxu0 0.0
    %603 = vmatpush1.msra.mxu0 %v220
    %604 = vmatprep.subr.mxu0 0.0
    %605 = vmatpush1.msra.mxu0 %v219
    %606 = vmatprep.subr.mxu0 0.0
    %607 = vmatpush1.msra.mxu0 %v218
    %608 = vmatprep.subr.mxu0 0.0
    %609 = vmatpush1.msra.mxu0 %v217
    %610 = vmatprep.subr.mxu0 0.0
    %611 = vmatpush1.msra.mxu0 %v216
    %612 = vmatprep.subr.mxu0 0.0
    %613 = vmatpush1.msra.mxu0 %v215
    %614 = vmatprep.subr.mxu0 0.0
    %615 = vmatpush1.msra.mxu0 %v214
    %616 = vmatprep.subr.mxu0 0.0
    %617 = vmatpush1.msra.mxu0 %v213
    %618 = vmatprep.subr.mxu0 0.0
    %619 = vmatpush1.msra.mxu0 %v212
    %620 = vmatprep.subr.mxu0 0.0
    %621 = vmatpush1.msra.mxu0 %v211
    %622 = vmatprep.subr.mxu0 0.0
    %623 = vmatpush1.msra.mxu0 %v210
    %624 = vmatprep.subr.mxu0 0.0
    %625 = vmatpush1.msra.mxu0 %v209
    %626 = vmatprep.subr.mxu0 0.0
    %627 = vmatpush1.msra.mxu0 %v208
    %628 = vmatprep.subr.mxu0 0.0
    %629 = vmatpush2.msra.mxu0 0.0
    %630 = vmatprep.subr.mxu0 0.0
    %631 = vmatpush2.msra.mxu0 0.0
    %632 = vmatprep.subr.mxu0 0.0
    %633 = vmatpush2.msra.mxu0 0.0
    %634 = vmatprep.subr.mxu0 0.0
    %635 = vmatpush2.msra.mxu0 0.0
    %636 = vmatprep.subr.mxu0 0.0
    %637 = vmatpush2.msra.mxu0 0.0
    %638 = vmatprep.subr.mxu0 0.0
    %639 = vmatpush2.msra.mxu0 0.0
    %640 = vmatprep.subr.mxu0 0.0
    %641 = vmatpush2.msra.mxu0 0.0
    %642 = vmatprep.subr.mxu0 0.0
    %643 = vmatpush2.msra.mxu0 0.0
    %644 = vmatprep.subr.mxu0 0.0
    %645 = vmatpush2.msra.mxu0 0.0
    %646 = vmatprep.subr.mxu0 0.0
    %647 = vmatpush2.msra.mxu0 0.0
    %648 = vmatprep.subr.mxu0 0.0
    %649 = vmatpush2.msra.mxu0 0.0
    %650 = vmatprep.subr.mxu0 0.0
    %651 = vmatpush2.msra.mxu0 0.0
    %652 = vmatprep.subr.mxu0 0.0
    %653 = vmatpush2.msra.mxu0 0.0
    %654 = vmatprep.subr.mxu0 0.0
    %655 = vmatpush2.msra.mxu0 0.0
    %656 = vmatprep.subr.mxu0 0.0
    %657 = vmatpush2.msra.mxu0 0.0
    %658 = vmatprep.subr.mxu0 0.0
    %659 = vmatpush2.msra.mxu0 0.0
    %660 = vmatprep.mubr.f32.mxu0 0.0
    %661 = vmatmul.mubr.f32.gmra.mxu0 %v592
    %v662 = vpop.f32.mrf.mxu0
    %v663 = vadd.f32 %v595, %v662
    %v664 = vpop.f32.mrf.mxu0
    %665 = vdwg.mxu0
    %v666 = vtanh.pop %v663
    %667 = vst [vmem:[%s594] sm:$0xff] %v666
    %s668 = scalar_lea.vmem [#allocation9], 48
    %v669 = vld [vmem:[%s668] sm:$0xff]
    %670 = vmatprep.subr.mxu0 0.0
    %671 = vmatpush1.msra.mxu0 %v223
    %672 = vmatprep.subr.mxu0 0.0
    %673 = vmatpush1.msra.mxu0 %v222
    %674 = vmatprep.subr.mxu0 0.0
    %675 = vmatpush1.msra.mxu0 %v221
    %676 = vmatprep.subr.mxu0 0.0
    %677 = vmatpush1.msra.mxu0 %v220
    %678 = vmatprep.subr.mxu0 0.0
    %679 = vmatpush1.msra.mxu0 %v219
    %680 = vmatprep.subr.mxu0 0.0
    %681 = vmatpush1.msra.mxu0 %v218
    %682 = vmatprep.subr.mxu0 0.0
    %683 = vmatpush1.msra.mxu0 %v217
    %684 = vmatprep.subr.mxu0 0.0
    %685 = vmatpush1.msra.mxu0 %v216
    %686 = vmatprep.subr.mxu0 0.0
    %687 = vmatpush1.msra.mxu0 %v215
    %688 = vmatprep.subr.mxu0 0.0
    %689 = vmatpush1.msra.mxu0 %v214
    %690 = vmatprep.subr.mxu0 0.0
    %691 = vmatpush1.msra.mxu0 %v213
    %692 = vmatprep.subr.mxu0 0.0
    %693 = vmatpush1.msra.mxu0 %v212
    %694 = vmatprep.subr.mxu0 0.0
    %695 = vmatpush1.msra.mxu0 %v211
    %696 = vmatprep.subr.mxu0 0.0
    %697 = vmatpush1.msra.mxu0 %v210
    %698 = vmatprep.subr.mxu0 0.0
    %699 = vmatpush1.msra.mxu0 %v209
    %700 = vmatprep.subr.mxu0 0.0
    %701 = vmatpush1.msra.mxu0 %v208
    %702 = vmatprep.subr.mxu0 0.0
    %703 = vmatpush2.msra.mxu0 0.0
    %704 = vmatprep.subr.mxu0 0.0
    %705 = vmatpush2.msra.mxu0 0.0
    %706 = vmatprep.subr.mxu0 0.0
    %707 = vmatpush2.msra.mxu0 0.0
    %708 = vmatprep.subr.mxu0 0.0
    %709 = vmatpush2.msra.mxu0 0.0
    %710 = vmatprep.subr.mxu0 0.0
    %711 = vmatpush2.msra.mxu0 0.0
    %712 = vmatprep.subr.mxu0 0.0
    %713 = vmatpush2.msra.mxu0 0.0
    %714 = vmatprep.subr.mxu0 0.0
    %715 = vmatpush2.msra.mxu0 0.0
    %716 = vmatprep.subr.mxu0 0.0
    %717 = vmatpush2.msra.mxu0 0.0
    %718 = vmatprep.subr.mxu0 0.0
    %719 = vmatpush2.msra.mxu0 0.0
    %720 = vmatprep.subr.mxu0 0.0
    %721 = vmatpush2.msra.mxu0 0.0
    %722 = vmatprep.subr.mxu0 0.0
    %723 = vmatpush2.msra.mxu0 0.0
    %724 = vmatprep.subr.mxu0 0.0
    %725 = vmatpush2.msra.mxu0 0.0
    %726 = vmatprep.subr.mxu0 0.0
    %727 = vmatpush2.msra.mxu0 0.0
    %728 = vmatprep.subr.mxu0 0.0
    %729 = vmatpush2.msra.mxu0 0.0
    %730 = vmatprep.subr.mxu0 0.0
    %731 = vmatpush2.msra.mxu0 0.0
    %732 = vmatprep.subr.mxu0 0.0
    %733 = vmatpush2.msra.mxu0 0.0
    %734 = vmatprep.mubr.f32.mxu0 0.0
    %735 = vmatmul.mubr.f32.gmra.mxu0 %v666
    %v736 = vpop.f32.mrf.mxu0
    %v737 = vadd.f32 %v669, %v736
    %v738 = vpop.f32.mrf.mxu0
    %739 = vdwg.mxu0
    %v740 = vtanh.pop %v737
    %741 = vst [vmem:[%s668] sm:$0xff] %v740
    %s742 = scalar_lea.vmem [#allocation9], 56
    %v743 = vld [vmem:[%s742] sm:$0xff]
    %744 = vmatprep.subr.mxu0 0.0
    %745 = vmatpush1.msra.mxu0 %v223
    %746 = vmatprep.subr.mxu0 0.0
    %747 = vmatpush1.msra.mxu0 %v222
    %748 = vmatprep.subr.mxu0 0.0
    %749 = vmatpush1.msra.mxu0 %v221
    %750 = vmatprep.subr.mxu0 0.0
    %751 = vmatpush1.msra.mxu0 %v220
    %752 = vmatprep.subr.mxu0 0.0
    %753 = vmatpush1.msra.mxu0 %v219
    %754 = vmatprep.subr.mxu0 0.0
    %755 = vmatpush1.msra.mxu0 %v218
    %756 = vmatprep.subr.mxu0 0.0
    %757 = vmatpush1.msra.mxu0 %v217
    %758 = vmatprep.subr.mxu0 0.0
    %759 = vmatpush1.msra.mxu0 %v216
    %760 = vmatprep.subr.mxu0 0.0
    %761 = vmatpush1.msra.mxu0 %v215
    %762 = vmatprep.subr.mxu0 0.0
    %763 = vmatpush1.msra.mxu0 %v214
    %764 = vmatprep.subr.mxu0 0.0
    %765 = vmatpush1.msra.mxu0 %v213
    %766 = vmatprep.subr.mxu0 0.0
    %767 = vmatpush1.msra.mxu0 %v212
    %768 = vmatprep.subr.mxu0 0.0
    %769 = vmatpush1.msra.mxu0 %v211
    %770 = vmatprep.subr.mxu0 0.0
    %771 = vmatpush1.msra.mxu0 %v210
    %772 = vmatprep.subr.mxu0 0.0
    %773 = vmatpush1.msra.mxu0 %v209
    %774 = vmatprep.subr.mxu0 0.0
    %775 = vmatpush1.msra.mxu0 %v208
    %776 = vmatprep.subr.mxu0 0.0
    %777 = vmatpush2.msra.mxu0 0.0
    %778 = vmatprep.subr.mxu0 0.0
    %779 = vmatpush2.msra.mxu0 0.0
    %780 = vmatprep.subr.mxu0 0.0
    %781 = vmatpush2.msra.mxu0 0.0
    %782 = vmatprep.subr.mxu0 0.0
    %783 = vmatpush2.msra.mxu0 0.0
    %784 = vmatprep.subr.mxu0 0.0
    %785 = vmatpush2.msra.mxu0 0.0
    %786 = vmatprep.subr.mxu0 0.0
    %787 = vmatpush2.msra.mxu0 0.0
    %788 = vmatprep.subr.mxu0 0.0
    %789 = vmatpush2.msra.mxu0 0.0
    %790 = vmatprep.subr.mxu0 0.0
    %791 = vmatpush2.msra.mxu0 0.0
    %792 = vmatprep.subr.mxu0 0.0
    %793 = vmatpush2.msra.mxu0 0.0
    %794 = vmatprep.subr.mxu0 0.0
    %795 = vmatpush2.msra.mxu0 0.0
    %796 = vmatprep.subr.mxu0 0.0
    %797 = vmatpush2.msra.mxu0 0.0
    %798 = vmatprep.subr.mxu0 0.0
    %799 = vmatpush2.msra.mxu0 0.0
    %800 = vmatprep.subr.mxu0 0.0
    %801 = vmatpush2.msra.mxu0 0.0
    %802 = vmatprep.subr.mxu0 0.0
    %803 = vmatpush2.msra.mxu0 0.0
    %804 = vmatprep.subr.mxu0 0.0
    %805 = vmatpush2.msra.mxu0 0.0
    %806 = vmatprep.subr.mxu0 0.0
    %807 = vmatpush2.msra.mxu0 0.0
    %808 = vmatprep.mubr.f32.mxu0 0.0
    %809 = vmatmul.mubr.f32.gmra.mxu0 %v740
    %v810 = vpop.f32.mrf.mxu0
    %v811 = vadd.f32 %v743, %v810
    %v812 = vpop.f32.mrf.mxu0
    %813 = vdwg.mxu0
    %v814 = vtanh.pop %v811
    %815 = vst [vmem:[%s742] sm:$0xff] %v814
    %816 = vst [vmem:[#allocation2] sm:$0xff] %v814
    // Predicated region
    $region34: #{tpu_custom_call.1} parent=1 // pred_check
      _
    $region35: #{tpu_custom_call.1} parent=1 // pred_check_branch
      %818 = sbr.rel (0) target = $region37
    $region36: #{tpu_custom_call.1} parent=1 // pred_region
      %s820 = ssub.s32 1024, 1024
      %821 = vsyncadd [#allocation5], %s820
      %s822 = sshll.u32 [#allocation9], 4
      %s823 = int_to_ptr.vmem [resolvable:$true] %s822
      %828 = dma.vmem_to_hbm [thread:$0]  %s823, 1024, %s4, [#allocation5], 128, 128, 8
    $region37: #{tpu_custom_call.1} parent=1 // pred_fallthru
      _
    // Predicated region
    $region38: #{tpu_custom_call.1} parent=1 // pred_check
      _
    $region39: #{tpu_custom_call.1} parent=1 // pred_check_branch
      %830 = sbr.rel (0) target = $region41
    $region40: #{tpu_custom_call.1} parent=1 // pred_region
      %831 = dma.done [#allocation5], 1024
    $region41: #{tpu_custom_call.1} parent=1 // pred_fallthru
      _
    %832 = vsyncpa [#allocation4], 1
    %833 = vsyncpa [#allocation7], 1
    %834 = vsyncpa [#allocation5], 1

</llo_original>
